<compile_context>
chip_gen: v7x
topology: tpu7x:2x2x1
jax: 0.10.0
libtpu: 0.0.40
codegen_flags: <defaults>
</compile_context>

<pallas_src>
import math

import jax
import jax.numpy as jnp
from jax.experimental import pallas as pl
from jax.experimental.pallas import tpu as pltpu

N_HIDDEN = 32
_LN_EPS = 1e-5
_SQRT_2_OVER_PI = 0.7978845608028654
_GELU_C = 0.044715
_ROW_TILE = 512   # ~85% of measured HBM roofline; VMEM working set is tiny on v5e/v6e/v7x


# ---------------------------- Pallas kernel ----------------------------

def _trf_block_kernel(x_ref, w1_ref, b1_ref, w2_ref, b2_ref, o_ref):
    """Fused TransformerBlock: LayerNorm -> Linear -> GELU -> Linear -> +residual.

    LN affine (gamma/beta) is folded into W1'/b1' by the wrapper. Matmul operands are
    bf16 (native MXU path) with f32 accumulation; all VPU/EUP math stays f32.
    """
    x = x_ref[...]                                        # (TM, D) rows of tokens, f32
    mu = jnp.mean(x, axis=-1, keepdims=True)
    xc = x - mu
    var = jnp.mean(xc * xc, axis=-1, keepdims=True)       # biased var, as nn.LayerNorm
    xn = xc * jax.lax.rsqrt(var + _LN_EPS)                # affine already folded into W1'/b1'

    h = jnp.dot(xn.astype(jnp.bfloat16), w1_ref[...],
                preferred_element_type=jnp.float32) + b1_ref[...]

    # tanh-form GELU (|gelu_tanh - gelu_erf| <~ 5e-4): 1 EUP tanh + ~6 VALU ops per element.
    g = 0.5 * h * (1.0 + jnp.tanh(_SQRT_2_OVER_PI * (h + _GELU_C * h * h * h)))

    y = jnp.dot(g.astype(jnp.bfloat16), w2_ref[...],
                preferred_element_type=jnp.float32) + b2_ref[...]

    o_ref[...] = y + x                                    # Dropout(p=0.6) = identity (eval)


# ------------------------------ wrapper ------------------------------

def transformer_block(x, params):
    """TransformerBlock forward.  x: (..., n_hidden) float32; params as in init_params."""
    gamma, beta, w1, b1, w2, b2 = params
    d = x.shape[-1]
    lead = x.shape[:-1]
    x2 = x.reshape(-1, d).astype(jnp.float32)
    m = x2.shape[0]

    # Fold LN affine into the first linear (one-time 32x128 fold, outside the grid loop):
    #   (ln(x)*gamma + beta) @ W1 + b1  ==  ln(x) @ (gamma[:,None]*W1) + (beta @ W1 + b1)
    w1f = (gamma.reshape(-1, 1) * w1).astype(jnp.bfloat16)      # (d, 4d)  bf16 MXU operand
    b1f = (beta.reshape(1, -1) @ w1 + b1).astype(jnp.float32)   # (1, 4d)  f32
    w2f = w2.astype(jnp.bfloat16)                               # (4d, d)  bf16 MXU operand
    b2f = b2.astype(jnp.float32)                                # (1, d)   f32

    # Fixed large row tile + cdiv grid; ragged last block is masked on store (per-row work
    # only, so the padded/garbage rows never reach HBM).
    tm = min(_ROW_TILE, max(8, ((m + 7) // 8) * 8))
    grid = (pl.cdiv(m, tm),)

    cost = pl.CostEstimate(
        flops=2 * 2 * m * d * (4 * d),                     # two matmuls
        transcendentals=m * (4 * d + 1),                   # tanh per hidden elem + rsqrt/row
        bytes_accessed=2 * m * d * 4 + 2 * (d * 4 * d) * 2 + (4 * d + d) * 4,
    )

    out = pl.pallas_call(
        _trf_block_kernel,
        out_shape=jax.ShapeDtypeStruct((m, d), jnp.float32),
        grid=grid,
        in_specs=[
            pl.BlockSpec((tm, d), lambda i: (i, 0)),        # x rows (only tiled operand)
            pl.BlockSpec((d, 4 * d), lambda i: (0, 0)),     # W1' (bf16, VMEM-resident)
            pl.BlockSpec((1, 4 * d), lambda i: (0, 0)),     # b1'
            pl.BlockSpec((4 * d, d), lambda i: (0, 0)),     # W2  (bf16, VMEM-resident)
            pl.BlockSpec((1, d), lambda i: (0, 0)),         # b2
        ],
        out_specs=pl.BlockSpec((tm, d), lambda i: (i, 0)),
        compiler_params=pltpu.CompilerParams(
            dimension_semantics=("parallel",)),             # v7x: shard row blocks over 2 TCs
        cost_estimate=cost,
    )(x2, w1f, b1f, w2f, b2f)
    return out.reshape(*lead, d)


# ------------------------ pure-JAX reference ------------------------

def transformer_block_ref(x, params):
    gamma, beta, w1, b1, w2, b2 = params
    mu = jnp.mean(x, axis=-1, keepdims=True)
    var = jnp.mean(jnp.square(x - mu), axis=-1, keepdims=True)
    xn = (x - mu) / jnp.sqrt(var + _LN_EPS)
    xn = xn * gamma[0] + beta[0]
    h = xn @ w1 + b1[0]
    h = jax.nn.gelu(h, approximate=False)                  # exact-erf GELU (PyTorch nn.GELU)
    y = h @ w2 + b2[0]
    return y + x                                           # Dropout identity (eval)


# ------------------------- deterministic params -------------------------

def init_params(key, n_hidden):
    k = jax.random.split(key, 6)
    gamma = 1.0 + 0.1 * jax.random.normal(k[0], (1, n_hidden), jnp.float32)
    beta = 0.1 * jax.random.normal(k[1], (1, n_hidden), jnp.float32)
    w1 = jax.random.normal(k[2], (n_hidden, 4 * n_hidden), jnp.float32) / math.sqrt(n_hidden)
    b1 = 0.01 * jax.random.normal(k[3], (1, 4 * n_hidden), jnp.float32)
    w2 = jax.random.normal(k[4], (4 * n_hidden, n_hidden), jnp.float32) / math.sqrt(4 * n_hidden)
    b2 = 0.01 * jax.random.normal(k[5], (1, n_hidden), jnp.float32)
    return (gamma, beta, w1, b1, w2, b2)


if __name__ == "__main__":
    key = jax.random.PRNGKey(0)
    pkey, xkey = jax.random.split(key)
    params = init_params(pkey, N_HIDDEN)
    x = jax.random.normal(xkey, (2, 8, N_HIDDEN), jnp.float32)   # (batch, seq, n_hidden)

    fwd = jax.jit(transformer_block)
    out = jax.block_until_ready(fwd(x, params))
    assert out.shape == x.shape and out.dtype == jnp.float32
    assert bool(jnp.all(jnp.isfinite(out)))

    # Tolerance covers bf16 MXU operands (f32 accumulate) + tanh-form GELU (<~5e-4 dev);
    # measured error is a few 1e-3 max.
    ref = transformer_block_ref(x, params)
    err = float(jnp.max(jnp.abs(out - ref)))
    assert err < 1e-2, f"max |pallas - ref| = {err}"
    print("KERNEL_OK")
</pallas_src>

<mosaic_0001>
module attributes {stable_mosaic.version = 11 : i64} {
  func.func @_trf_block_kernel(%arg0: i32, %arg1: memref<16x32xf32, #tpu.memory_space<vmem>>, %arg2: memref<32x128xbf16, #tpu.memory_space<vmem>>, %arg3: memref<1x128xf32, #tpu.memory_space<vmem>>, %arg4: memref<128x32xbf16, #tpu.memory_space<vmem>>, %arg5: memref<1x32xf32, #tpu.memory_space<vmem>>, %arg6: memref<16x32xf32, #tpu.memory_space<vmem>>) attributes {dimension_semantics = [#tpu.dimension_semantics<parallel>], iteration_bounds = array<i64: 1>, scalar_prefetch = 0 : i64, scratch_operands = 0 : i64, tpu.core_type = #tpu.core_type<tc>, window_params = [{transform_indices = @transform_0, window_bounds = array<i64: 16, 32>}, {pipeline_mode = #tpu.pipeline_mode<synchronous>, transform_indices = @transform_1, window_bounds = array<i64: 32, 128>}, {pipeline_mode = #tpu.pipeline_mode<synchronous>, transform_indices = @transform_2, window_bounds = array<i64: 1, 128>}, {pipeline_mode = #tpu.pipeline_mode<synchronous>, transform_indices = @transform_3, window_bounds = array<i64: 128, 32>}, {pipeline_mode = #tpu.pipeline_mode<synchronous>, transform_indices = @transform_4, window_bounds = array<i64: 1, 32>}, {transform_indices = @transform_5, window_bounds = array<i64: 16, 32>}]} {
    %c0 = arith.constant 0 : index
    %c0_0 = arith.constant 0 : index
    %0 = vector.load %arg1[%c0, %c0_0] : memref<16x32xf32, #tpu.memory_space<vmem>>, vector<16x32xf32>
    %cst = arith.constant dense<0.000000e+00> : vector<16xf32>
    %1 = vector.multi_reduction <add>, %0, %cst [1] : vector<16x32xf32> to vector<16xf32>
    %2 = vector.shape_cast %1 : vector<16xf32> to vector<16x1xf32>
    %cst_1 = arith.constant 3.200000e+01 : f32
    %3 = vector.broadcast %cst_1 : f32 to vector<16x1xf32>
    %4 = arith.divf %2, %3 : vector<16x1xf32>
    %5 = vector.broadcast %4 : vector<16x1xf32> to vector<16x32xf32>
    %6 = arith.subf %0, %5 : vector<16x32xf32>
    %7 = arith.mulf %6, %6 : vector<16x32xf32>
    %cst_2 = arith.constant dense<0.000000e+00> : vector<16xf32>
    %8 = vector.multi_reduction <add>, %7, %cst_2 [1] : vector<16x32xf32> to vector<16xf32>
    %9 = vector.shape_cast %8 : vector<16xf32> to vector<16x1xf32>
    %cst_3 = arith.constant 3.200000e+01 : f32
    %10 = vector.broadcast %cst_3 : f32 to vector<16x1xf32>
    %11 = arith.divf %9, %10 : vector<16x1xf32>
    %cst_4 = arith.constant 9.99999974E-6 : f32
    %12 = vector.broadcast %cst_4 : f32 to vector<16x1xf32>
    %13 = arith.addf %11, %12 : vector<16x1xf32>
    %14 = math.rsqrt %13 : vector<16x1xf32>
    %15 = vector.broadcast %14 : vector<16x1xf32> to vector<16x32xf32>
    %16 = arith.mulf %6, %15 : vector<16x32xf32>
    %17 = arith.truncf %16 : vector<16x32xf32> to vector<16x32xbf16>
    %c0_5 = arith.constant 0 : index
    %c0_6 = arith.constant 0 : index
    %18 = vector.load %arg2[%c0_5, %c0_6] : memref<32x128xbf16, #tpu.memory_space<vmem>>, vector<32x128xbf16>
    %cst_7 = arith.constant dense<0.000000e+00> : vector<16x128xf32>
    %19 = tpu.matmul %17, %18, %cst_7 {dimension_numbers = #tpu.dot_dimension_numbers<[1], [0], [0], [1], [0, 0, 1, 1], [], []>} : vector<16x32xbf16>, vector<32x128xbf16>, vector<16x128xf32> -> vector<16x128xf32>
    %c0_8 = arith.constant 0 : index
    %c0_9 = arith.constant 0 : index
    %20 = vector.load %arg3[%c0_8, %c0_9] : memref<1x128xf32, #tpu.memory_space<vmem>>, vector<1x128xf32>
    %21 = vector.broadcast %20 : vector<1x128xf32> to vector<16x128xf32>
    %22 = arith.addf %19, %21 : vector<16x128xf32>
    %cst_10 = arith.constant 5.000000e-01 : f32
    %23 = vector.broadcast %cst_10 : f32 to vector<16x128xf32>
    %24 = arith.mulf %23, %22 : vector<16x128xf32>
    %cst_11 = arith.constant 4.471500e-02 : f32
    %25 = vector.broadcast %cst_11 : f32 to vector<16x128xf32>
    %26 = arith.mulf %25, %22 : vector<16x128xf32>
    %27 = arith.mulf %26, %22 : vector<16x128xf32>
    %28 = arith.mulf %27, %22 : vector<16x128xf32>
    %29 = arith.addf %22, %28 : vector<16x128xf32>
    %cst_12 = arith.constant 0.797884583 : f32
    %30 = vector.broadcast %cst_12 : f32 to vector<16x128xf32>
    %31 = arith.mulf %30, %29 : vector<16x128xf32>
    %32 = math.tanh %31 : vector<16x128xf32>
    %cst_13 = arith.constant 1.000000e+00 : f32
    %33 = vector.broadcast %cst_13 : f32 to vector<16x128xf32>
    %34 = arith.addf %33, %32 : vector<16x128xf32>
    %35 = arith.mulf %24, %34 : vector<16x128xf32>
    %36 = arith.truncf %35 : vector<16x128xf32> to vector<16x128xbf16>
    %c0_14 = arith.constant 0 : index
    %c0_15 = arith.constant 0 : index
    %37 = vector.load %arg4[%c0_14, %c0_15] : memref<128x32xbf16, #tpu.memory_space<vmem>>, vector<128x32xbf16>
    %cst_16 = arith.constant dense<0.000000e+00> : vector<16x32xf32>
    %38 = tpu.matmul %36, %37, %cst_16 {dimension_numbers = #tpu.dot_dimension_numbers<[1], [0], [0], [1], [0, 0, 1, 1], [], []>} : vector<16x128xbf16>, vector<128x32xbf16>, vector<16x32xf32> -> vector<16x32xf32>
    %c0_17 = arith.constant 0 : index
    %c0_18 = arith.constant 0 : index
    %39 = vector.load %arg5[%c0_17, %c0_18] : memref<1x32xf32, #tpu.memory_space<vmem>>, vector<1x32xf32>
    %40 = vector.broadcast %39 : vector<1x32xf32> to vector<16x32xf32>
    %41 = arith.addf %38, %40 : vector<16x32xf32>
    %42 = arith.addf %41, %0 : vector<16x32xf32>
    %c0_19 = arith.constant 0 : index
    %c0_20 = arith.constant 0 : index
    %43 = vector.load %arg6[%c0_19, %c0_20] : memref<16x32xf32, #tpu.memory_space<vmem>>, vector<16x32xf32>
    tpu.vector_store %arg6[%c0_19, %c0_20], %42 {strides = array<i32>} : memref<16x32xf32, #tpu.memory_space<vmem>>, vector<16x32xf32>,
    return
  }
  func.func @transform_0(%arg0: i32) -> (i32, i32) {
    %c0_i32 = arith.constant 0 : i32
    %c0_i32_0 = arith.constant 0 : i32
    return %arg0, %c0_i32 : i32, i32
  }
  func.func @transform_1(%arg0: i32) -> (i32, i32) {
    %c0_i32 = arith.constant 0 : i32
    %c0_i32_0 = arith.constant 0 : i32
    %c0_i32_1 = arith.constant 0 : i32
    return %c0_i32, %c0_i32_0 : i32, i32
  }
  func.func @transform_2(%arg0: i32) -> (i32, i32) {
    %c0_i32 = arith.constant 0 : i32
    %c0_i32_0 = arith.constant 0 : i32
    %c0_i32_1 = arith.constant 0 : i32
    return %c0_i32, %c0_i32_0 : i32, i32
  }
  func.func @transform_3(%arg0: i32) -> (i32, i32) {
    %c0_i32 = arith.constant 0 : i32
    %c0_i32_0 = arith.constant 0 : i32
    %c0_i32_1 = arith.constant 0 : i32
    return %c0_i32, %c0_i32_0 : i32, i32
  }
  func.func @transform_4(%arg0: i32) -> (i32, i32) {
    %c0_i32 = arith.constant 0 : i32
    %c0_i32_0 = arith.constant 0 : i32
    %c0_i32_1 = arith.constant 0 : i32
    return %c0_i32, %c0_i32_0 : i32, i32
  }
  func.func @transform_5(%arg0: i32) -> (i32, i32) {
    %c0_i32 = arith.constant 0 : i32
    %c0_i32_0 = arith.constant 0 : i32
    return %arg0, %c0_i32 : i32, i32
  }
}

</mosaic_0001>

<llo_original>
// kernel: transformer_block.1
$region0: #{transformer_block.1}
  #allocation0 [shape = 'u32[]', space=smem, size = 0x4, offset = 0x4, fixed_abs, tag = 'smem constant byte address 0x4 - core index']
  #allocation1 [shape = 'u32[144,128]{1,0:T(1,128)}', space=vmem, size = 0x12000, scoped, tag = 'internal scratch']
  %s0 = inlined_call_operand.vmem [shape: f32[16,32], index: 0, kind: input, shape index: {}]
  %s1 = inlined_call_operand.vmem [shape: bf16[32,128], index: 1, kind: input, shape index: {}]
  %s2 = inlined_call_operand.vmem [shape: f32[1,128], index: 2, kind: input, shape index: {}]
  %s3 = inlined_call_operand.vmem [shape: bf16[128,32], index: 3, kind: input, shape index: {}]
  %s4 = inlined_call_operand.vmem [shape: f32[1,32], index: 4, kind: input, shape index: {}]
  %s5 = inlined_call_operand.hbm [shape: f32[16,32], index: 5, kind: output, shape index: {}]
  %s6 = sld [smem:[#allocation0]]
  $region30: #{transformer_block.1} parent=0
    _
  %s8 = ssub.s32 1, %s6
  %s9 = scalar_select 0, %s8, %s6
  $region1: #{transformer_block.1} parent=0
    #allocation2 [shape = 'u8[8192]{0}', space=vmem, size = 0x2000, scoped, tag = 'output window, operand 0, single buffered']
    #allocation3 [shape = 's32[1]{0}', space=sflag, size = 0x4, scoped, tag = 'scoped memory for transformer_block.1']
    %10 = vsyncpa [#allocation3], 0
    // Predicated region
    $region2: #{transformer_block.1} parent=1 // pred_check
      _
    $region3: #{transformer_block.1} parent=1 // pred_check_branch
      %12 = sbr.rel (0) target = $region5
    $region4: #{transformer_block.1} parent=1 // pred_region
      _
    $region5: #{transformer_block.1} parent=1 // pred_fallthru
      _
    // Predicated region
    $region6: #{transformer_block.1} parent=1 // pred_check
      _
    $region7: #{transformer_block.1} parent=1 // pred_check_branch
      %14 = sbr.rel (0) target = $region9
    $region8: #{transformer_block.1} parent=1 // pred_region
      _
    $region9: #{transformer_block.1} parent=1 // pred_fallthru
      _
    // Predicated region
    $region10: #{transformer_block.1} parent=1 // pred_check
      _
    $region11: #{transformer_block.1} parent=1 // pred_check_branch
      %16 = sbr.rel (0) target = $region13
    $region12: #{transformer_block.1} parent=1 // pred_region
      _
    $region13: #{transformer_block.1} parent=1 // pred_fallthru
      _
    // Predicated region
    $region14: #{transformer_block.1} parent=1 // pred_check
      _
    $region15: #{transformer_block.1} parent=1 // pred_check_branch
      %18 = sbr.rel (0) target = $region17
    $region16: #{transformer_block.1} parent=1 // pred_region
      _
    $region17: #{transformer_block.1} parent=1 // pred_fallthru
      _
    // Predicated region
    $region18: #{transformer_block.1} parent=1 // pred_check
      _
    $region19: #{transformer_block.1} parent=1 // pred_check_branch
      %20 = sbr.rel (0) target = $region21
    $region20: #{transformer_block.1} parent=1 // pred_region
      _
    $region21: #{transformer_block.1} parent=1 // pred_fallthru
      _
    %v22 = vld [vmem:[%s0] sm:$0xff]
    %v23 = vld [vmem:[%s0 + $0x8] sm:$0xff]
    %vm24 = vcmask 261120
    %v25 = vsel %vm24, %v22, 0.0
    %26 = vadd.xlane.f32.xlu0 %v25
    %v27 = vpop.xlane.xlu0 %26
    %v28 = vsel %vm24, %v23, 0.0
    %29 = vadd.xlane.f32.xlu0 %v28
    %v30 = vpop.xlane.xlu0 %29
    %v31 = vrcp.pop 32.0
    %v32 = vmul.f32 %v27, %v31
    %v33 = vmul.f32 %v30, %v31
    %v34 = vsub.f32 %v22, %v32
    %v35 = vsub.f32 %v23, %v33
    %v36 = vmul.f32 %v34, %v34
    %v37 = vmul.f32 %v35, %v35
    %v38 = vsel %vm24, %v36, 0.0
    %39 = vadd.xlane.f32.xlu0 %v38
    %v40 = vpop.xlane.xlu0 %39
    %v41 = vsel %vm24, %v37, 0.0
    %42 = vadd.xlane.f32.xlu0 %v41
    %v43 = vpop.xlane.xlu0 %42
    %v44 = vmul.f32 %v40, %v31
    %v45 = vmul.f32 %v43, %v31
    %v46 = vadd.f32 %v44, 1e-05
    %v47 = vadd.f32 %v45, 1e-05
    %v48 = vrsqrt.pop %v46
    %v49 = vrsqrt.pop %v47
    %v50 = vmul.f32 %v34, %v48
    %v51 = vmul.f32 %v35, %v49
    %v52 = vpack.c.bf16 %v51, %v50
    %v53 = vld [vmem:[%s1] sm:$0xf]
    %v54 = vld [vmem:[%s1 + $0x4] sm:$0xf]
    %v55 = vld [vmem:[%s1 + $0x8] sm:$0xf]
    %v56 = vld [vmem:[%s1 + $0xc] sm:$0xf]
    %v57 = vld [vmem:[%s2] sm:$0x1]
    %v59 = vlaneseq
    %v60 = vshrl.u32 %v59, 7
    %v61 = vsub.s32 0, %v60
    %v62 = vrot.slane %v57, %v61
    %v68 = vunpack.c.l.b16 %v53
    %v69 = vunpack.c.l.b16 %v54
    %v70 = vunpack.c.l.b16 %v55
    %v71 = vunpack.c.l.b16 %v56
    %v72 = vpack.c.b16 %v69, %v68
    %v73 = vpack.c.b16 %v71, %v70
    %v77 = vsel %vm24, %v52, 0
    %79 = vmatprep.subr.bf16.mxu0 0
    %80 = vmatpush1.bf16.msra.mxu0 %v72
    %81 = vmatprep.subr.bf16.mxu0 0
    %82 = vmatpush1.bf16.msra.mxu0 %v73
    %83 = vmatprep.subr.bf16.mxu0 0
    %84 = vmatpush1.bf16.msra.mxu0 0
    %85 = vmatprep.subr.bf16.mxu0 0
    %86 = vmatpush1.bf16.msra.mxu0 0
    %87 = vmatprep.subr.bf16.mxu0 0
    %88 = vmatpush1.bf16.msra.mxu0 0
    %89 = vmatprep.subr.bf16.mxu0 0
    %90 = vmatpush1.bf16.msra.mxu0 0
    %91 = vmatprep.subr.bf16.mxu0 0
    %92 = vmatpush1.bf16.msra.mxu0 0
    %93 = vmatprep.subr.bf16.mxu0 0
    %94 = vmatpush1.bf16.msra.mxu0 0
    %95 = vmatprep.subr.bf16.mxu0 0
    %96 = vmatpush1.bf16.msra.mxu0 0
    %97 = vmatprep.subr.bf16.mxu0 0
    %98 = vmatpush1.bf16.msra.mxu0 0
    %99 = vmatprep.subr.bf16.mxu0 0
    %100 = vmatpush1.bf16.msra.mxu0 0
    %101 = vmatprep.subr.bf16.mxu0 0
    %102 = vmatpush1.bf16.msra.mxu0 0
    %103 = vmatprep.subr.bf16.mxu0 0
    %104 = vmatpush1.bf16.msra.mxu0 0
    %105 = vmatprep.subr.bf16.mxu0 0
    %106 = vmatpush1.bf16.msra.mxu0 0
    %107 = vmatprep.subr.bf16.mxu0 0
    %108 = vmatpush1.bf16.msra.mxu0 0
    %109 = vmatprep.subr.bf16.mxu0 0
    %110 = vmatpush1.bf16.msra.mxu0 0
    %111 = vmatprep.mubr.bf16.mxu0 0
    %112 = vmatmul.mubr.bf16.gmra.mrb[0].mxu0 %v77
    %v113 = vpop.f32.mrb[0].mxu0
    %v114 = vadd.f32 %v62, %v113
    %v115 = vpop.f32.mrb[0].mxu0
    %v116 = vpop.f32.mrb[0].mxu0
    %v117 = vadd.f32 %v62, %v116
    %v118 = vpop.f32.mrb[0].mxu0
    %119 = vdwg.mxu0
    %v120 = vmul.f32 %v114, 0.5
    %v121 = vmul.f32 %v117, 0.5
    %v122 = vmul.f32 %v114, 0.044715
    %v123 = vmul.f32 %v117, 0.044715
    %v124 = vmul.f32 %v122, %v114
    %v125 = vmul.f32 %v123, %v117
    %v126 = vmul.f32 %v124, %v114
    %v127 = vmul.f32 %v125, %v117
    %v128 = vadd.f32 %v114, %v126
    %v129 = vadd.f32 %v117, %v127
    %v130 = vmul.f32 %v128, 0.7978846
    %v131 = vmul.f32 %v129, 0.7978846
    %v132 = vtanh.pop %v130
    %v133 = vtanh.pop %v131
    %v134 = vadd.f32 %v132, 1.0
    %v135 = vadd.f32 %v133, 1.0
    %v136 = vmul.f32 %v120, %v134
    %v137 = vmul.f32 %v121, %v135
    %v138 = vpack.c.bf16 %v137, %v136
    %v139 = vld [vmem:[%s3] sm:$0xf]
    %v140 = vld [vmem:[%s3 + $0x4] sm:$0xf]
    %v141 = vld [vmem:[%s3 + $0x8] sm:$0xf]
    %v142 = vld [vmem:[%s3 + $0xc] sm:$0xf]
    %v143 = vld [vmem:[%s3 + $0x10] sm:$0xf]
    %v144 = vld [vmem:[%s3 + $0x14] sm:$0xf]
    %v145 = vld [vmem:[%s3 + $0x18] sm:$0xf]
    %v146 = vld [vmem:[%s3 + $0x1c] sm:$0xf]
    %v147 = vld [vmem:[%s3 + $0x20] sm:$0xf]
    %v148 = vld [vmem:[%s3 + $0x24] sm:$0xf]
    %v149 = vld [vmem:[%s3 + $0x28] sm:$0xf]
    %v150 = vld [vmem:[%s3 + $0x2c] sm:$0xf]
    %v151 = vld [vmem:[%s3 + $0x30] sm:$0xf]
    %v152 = vld [vmem:[%s3 + $0x34] sm:$0xf]
    %v153 = vld [vmem:[%s3 + $0x38] sm:$0xf]
    %v154 = vld [vmem:[%s3 + $0x3c] sm:$0xf]
    %v155 = vld [vmem:[%s4] sm:$0x1]
    %v157 = vlaneseq
    %v158 = vshrl.u32 %v157, 7
    %v159 = vsub.s32 0, %v158
    %v160 = vrot.slane %v155, %v159
    %v178 = vunpack.c.l.b16 %v139
    %v179 = vunpack.c.l.b16 %v140
    %v180 = vunpack.c.l.b16 %v141
    %v181 = vunpack.c.l.b16 %v142
    %v182 = vunpack.c.l.b16 %v143
    %v183 = vunpack.c.l.b16 %v144
    %v184 = vunpack.c.l.b16 %v145
    %v185 = vunpack.c.l.b16 %v146
    %v186 = vunpack.c.l.b16 %v147
    %v187 = vunpack.c.l.b16 %v148
    %v188 = vunpack.c.l.b16 %v149
    %v189 = vunpack.c.l.b16 %v150
    %v190 = vunpack.c.l.b16 %v151
    %v191 = vunpack.c.l.b16 %v152
    %v192 = vunpack.c.l.b16 %v153
    %v193 = vunpack.c.l.b16 %v154
    %v194 = vpack.c.b16 %v179, %v178
    %v195 = vpack.c.b16 %v181, %v180
    %v196 = vpack.c.b16 %v183, %v182
    %v197 = vpack.c.b16 %v185, %v184
    %v198 = vpack.c.b16 %v187, %v186
    %v199 = vpack.c.b16 %v189, %v188
    %v200 = vpack.c.b16 %v191, %v190
    %v201 = vpack.c.b16 %v193, %v192
    %210 = vmatprep.subr.bf16.mxu0 0
    %211 = vmatpush1.bf16.msra.mxu0 %v194
    %212 = vmatprep.subr.bf16.mxu0 0
    %213 = vmatpush1.bf16.msra.mxu0 %v195
    %214 = vmatprep.subr.bf16.mxu0 0
    %215 = vmatpush1.bf16.msra.mxu0 %v196
    %216 = vmatprep.subr.bf16.mxu0 0
    %217 = vmatpush1.bf16.msra.mxu0 %v197
    %218 = vmatprep.subr.bf16.mxu0 0
    %219 = vmatpush1.bf16.msra.mxu0 %v198
    %220 = vmatprep.subr.bf16.mxu0 0
    %221 = vmatpush1.bf16.msra.mxu0 %v199
    %222 = vmatprep.subr.bf16.mxu0 0
    %223 = vmatpush1.bf16.msra.mxu0 %v200
    %224 = vmatprep.subr.bf16.mxu0 0
    %225 = vmatpush1.bf16.msra.mxu0 %v201
    %226 = vmatprep.subr.bf16.mxu0 0
    %227 = vmatpush1.bf16.msra.mxu0 0
    %228 = vmatprep.subr.bf16.mxu0 0
    %229 = vmatpush1.bf16.msra.mxu0 0
    %230 = vmatprep.subr.bf16.mxu0 0
    %231 = vmatpush1.bf16.msra.mxu0 0
    %232 = vmatprep.subr.bf16.mxu0 0
    %233 = vmatpush1.bf16.msra.mxu0 0
    %234 = vmatprep.subr.bf16.mxu0 0
    %235 = vmatpush1.bf16.msra.mxu0 0
    %236 = vmatprep.subr.bf16.mxu0 0
    %237 = vmatpush1.bf16.msra.mxu0 0
    %238 = vmatprep.subr.bf16.mxu0 0
    %239 = vmatpush1.bf16.msra.mxu0 0
    %240 = vmatprep.subr.bf16.mxu0 0
    %241 = vmatpush1.bf16.msra.mxu0 0
    %242 = vmatprep.mubr.bf16.mxu0 0
    %243 = vmatmul.mubr.bf16.gmra.mrb[0].mxu0 %v138
    %v244 = vpop.f32.mrb[0].mxu0
    %v245 = vadd.f32 %v160, %v244
    %v246 = vpop.f32.mrb[0].mxu0
    %v247 = vpop.f32.mrb[0].mxu0
    %v248 = vadd.f32 %v160, %v247
    %v249 = vpop.f32.mrb[0].mxu0
    %250 = vdwg.mxu0
    %v251 = vadd.f32 %v245, %v22
    %v252 = vadd.f32 %v248, %v23
    %253 = vst.msk [vmem:[#allocation2] sm:$0xff] %vm24, %v251
    %254 = vst.msk [vmem:[#allocation2 + $0x8] sm:$0xff] %vm24, %v252
    // Predicated region
    $region22: #{transformer_block.1} parent=1 // pred_check
      _
    $region23: #{transformer_block.1} parent=1 // pred_check_branch
      %256 = sbr.rel (0) target = $region25
    $region24: #{transformer_block.1} parent=1 // pred_region
      %s258 = ssub.s32 256, 256
      %259 = vsyncadd [#allocation3], %s258
      %s260 = sshll.u32 [#allocation2], 4
      %s261 = int_to_ptr.vmem [resolvable:$true] %s260
      %266 = dma.vmem_to_hbm [thread:$0]  %s261, 256, %s5, [#allocation3], 128, 128, 8
    $region25: #{transformer_block.1} parent=1 // pred_fallthru
      _
    // Predicated region
    $region26: #{transformer_block.1} parent=1 // pred_check
      _
    $region27: #{transformer_block.1} parent=1 // pred_check_branch
      %268 = sbr.rel (0) target = $region29
    $region28: #{transformer_block.1} parent=1 // pred_region
      %269 = dma.done [#allocation3], 256
    $region29: #{transformer_block.1} parent=1 // pred_fallthru
      _
    %270 = vsyncpa [#allocation3], 1

</llo_original>
